<compile_context>
chip_gen: v6e
topology: v6e:2x2x1
jax: 0.10.0
libtpu: 0.0.40
codegen_flags: <defaults>
</compile_context>

<pallas_src>
import functools

import jax
import jax.numpy as jnp
from jax.experimental import pallas as pl
from jax.experimental.pallas import tpu as pltpu


def _round_up(x: int, m: int) -> int:
    return (x + m - 1) // m * m


def _lm_head_kernel(x_ref, w1_ref, b1_ref, g_ref, beta_ref, wd_ref, bd_ref,
                    o_ref, h_ref, *, eps, approximate_gelu):
    """One (super-block s, vocab-tile j, row-tile r) grid step.

    x:[tm,H] f32   w1:[H,H] f32   b1/g/beta:[1,H] f32
    wd:[H,tn] bf16 bd:[1,tn] f32  ->  o:[tm,tn]
    h_ref:[R,tm,H] bf16 scratch, carried across the vocab axis (j).
    """
    j = pl.program_id(1)
    r = pl.program_id(2)

    # Transform stage: compute once per row tile (first vocab tile only) and
    # cache it in the super-block scratch; later vocab tiles reuse it.
    @pl.when(j == 0)
    def _():
        x = x_ref[...]
        h = jnp.dot(x, w1_ref[...], preferred_element_type=jnp.float32)
        h = h + b1_ref[...]
        if approximate_gelu:
            # 'gelu_new' / 'gelu_fast' / 'gelu_pytorch_tanh' configs.
            h = jax.nn.gelu(h, approximate=True)
        else:
            # TODO(synk): exact-erf GELU (hidden_act='gelu'); requires erf
            # lowering support in Mosaic.
            h = 0.5 * h * (1.0 + jax.scipy.special.erf(h * (1.0 / jnp.sqrt(2.0))))
        mu = jnp.mean(h, axis=-1, keepdims=True)
        var = jnp.mean(jnp.square(h - mu), axis=-1, keepdims=True)
        hn = (h - mu) * jax.lax.rsqrt(var + eps)
        hn = hn * g_ref[...] + beta_ref[...]
        h_ref[r] = hn.astype(h_ref.dtype)

    # Decoder stage: bf16 weight-streaming matmul, f32 accumulation + bias.
    logits = jnp.dot(h_ref[r], wd_ref[...], preferred_element_type=jnp.float32)
    o_ref[...] = (logits + bd_ref[...]).astype(o_ref.dtype)


def xlmr_lm_prediction_head(hidden_states, w_dense, b_dense, ln_weight,
                            ln_bias, w_decoder, b_decoder, *,
                            eps=1e-5, block_rows=256, block_vocab=512,
                            superblock_rows=1024, approximate_gelu=True,
                            decoder_dtype=jnp.bfloat16):
    """hidden_states: [..., H].  Weights are [in, out].  Returns [..., V]."""
    *lead, H = hidden_states.shape
    V = w_decoder.shape[1]
    out_dtype = hidden_states.dtype

    x = hidden_states.reshape(-1, H).astype(jnp.float32)
    N = x.shape[0]

    # Row tile over tokens (second-minor dim => multiple of 8).
    tm = min(block_rows, _round_up(N, 8))
    tm = _round_up(tm, 8)

    # Rows held resident in the VMEM h-scratch per "super block".  The
    # decoder weight is streamed once per super block.
    rows_super = min(_round_up(superblock_rows, tm), _round_up(N, tm))
    rows_super = max(rows_super, tm)
    R = rows_super // tm

    n_pad = _round_up(N, rows_super)
    if n_pad != N:
        x = jnp.pad(x, ((0, n_pad - N), (0, 0)))
    S = n_pad // rows_super

    # Vocab tiling: lane-dense tiles (multiples of 128); pad vocab up.
    tn = min(block_vocab, _round_up(V, 128))
    tn = _round_up(tn, 128)
    v_pad = _round_up(V, tn)
    J = v_pad // tn

    wd = w_decoder.astype(decoder_dtype)                   # streamed weight (bf16)
    bd = b_decoder.astype(jnp.float32).reshape(1, V)
    if v_pad != V:
        wd = jnp.pad(wd, ((0, 0), (0, v_pad - V)))
        bd = jnp.pad(bd, ((0, 0), (0, v_pad - V)))

    w1 = w_dense.astype(jnp.float32)                       # resident
    b1 = b_dense.astype(jnp.float32).reshape(1, H)
    gamma = ln_weight.astype(jnp.float32).reshape(1, H)
    beta = ln_bias.astype(jnp.float32).reshape(1, H)

    grid = (S, J, R)

    # x is only read while j == 0; when j > 0 the index_map points at the
    # last block visited for this super-block so Pallas issues no refetch.
    def x_map(s, j, r):
        return (jnp.where(j == 0, s * R + r, s * R + (R - 1)), 0)

    out = pl.pallas_call(
        functools.partial(_lm_head_kernel, eps=eps,
                          approximate_gelu=approximate_gelu),
        out_shape=jax.ShapeDtypeStruct((n_pad, v_pad), out_dtype),
        grid_spec=pltpu.PrefetchScalarGridSpec(
            num_scalar_prefetch=0,
            grid=grid,
            in_specs=[
                pl.BlockSpec((tm, H), x_map),                    # x rows
                pl.BlockSpec((H, H), lambda s, j, r: (0, 0)),    # dense weight (resident)
                pl.BlockSpec((1, H), lambda s, j, r: (0, 0)),    # dense bias
                pl.BlockSpec((1, H), lambda s, j, r: (0, 0)),    # LN gamma
                pl.BlockSpec((1, H), lambda s, j, r: (0, 0)),    # LN beta
                pl.BlockSpec((H, tn), lambda s, j, r: (0, j)),   # decoder weight (streamed)
                pl.BlockSpec((1, tn), lambda s, j, r: (0, j)),   # decoder bias
            ],
            out_specs=pl.BlockSpec((tm, tn), lambda s, j, r: (s * R + r, j)),
            scratch_shapes=[pltpu.VMEM((R, tm, H), jnp.bfloat16)],
        ),
        compiler_params=pltpu.CompilerParams(
            dimension_semantics=("parallel", "arbitrary", "arbitrary")),
    )(x, w1, b1, gamma, beta, wd, bd)

    logits = out[:N, :V]
    return logits.reshape(*lead, V)


if __name__ == "__main__":
    # Small synthetic config: batch=2, seq=16, hidden=32, vocab=200.
    B, S, H, V = 2, 16, 32, 200
    EPS = 1e-5

    key = jax.random.PRNGKey(0)
    k_x, k_w1, k_b1, k_g, k_bt, k_wd, k_bd = jax.random.split(key, 7)

    hidden_states = jax.random.normal(k_x, (B, S, H), dtype=jnp.float32)
    # Weights stored as [in, out] (i.e. W^T of the PyTorch nn.Linear layout).
    w_dense = jax.random.normal(k_w1, (H, H), dtype=jnp.float32) * 0.05
    b_dense = jax.random.normal(k_b1, (H,), dtype=jnp.float32) * 0.02
    ln_weight = 1.0 + 0.1 * jax.random.normal(k_g, (H,), dtype=jnp.float32)
    ln_bias = 0.1 * jax.random.normal(k_bt, (H,), dtype=jnp.float32)
    w_decoder = jax.random.normal(k_wd, (H, V), dtype=jnp.float32) * 0.05
    b_decoder = jax.random.normal(k_bd, (V,), dtype=jnp.float32) * 0.02

    # Small block sizes so the toy shapes exercise the full 3-D grid:
    # 2 super-blocks x 2 vocab tiles x 2 row tiles, with scratch reuse.
    logits = xlmr_lm_prediction_head(
        hidden_states, w_dense, b_dense, ln_weight, ln_bias,
        w_decoder, b_decoder, eps=EPS,
        block_rows=8, block_vocab=128, superblock_rows=16)
    logits = jax.block_until_ready(logits)

    # Pure-JAX f32 reference (same tanh-approx GELU).
    xr = hidden_states.reshape(-1, H)
    h = jax.nn.gelu(xr @ w_dense + b_dense, approximate=True)
    mu = h.mean(-1, keepdims=True)
    var = ((h - mu) ** 2).mean(-1, keepdims=True)
    hn = (h - mu) * jax.lax.rsqrt(var + EPS) * ln_weight + ln_bias
    ref = (hn @ w_decoder + b_decoder).reshape(B, S, V)

    assert logits.shape == (B, S, V)
    max_err = float(jnp.max(jnp.abs(logits - ref)))
    assert jnp.allclose(logits, ref, atol=2e-2, rtol=2e-2), max_err

    print("KERNEL_OK")
</pallas_src>

<mosaic_0001>
module attributes {stable_mosaic.version = 11 : i64} {
  func.func @_lm_head_kernel(%arg0: i32, %arg1: i32, %arg2: i32, %arg3: memref<8x32xf32, #tpu.memory_space<vmem>>, %arg4: memref<32x32xf32, #tpu.memory_space<vmem>>, %arg5: memref<1x32xf32, #tpu.memory_space<vmem>>, %arg6: memref<1x32xf32, #tpu.memory_space<vmem>>, %arg7: memref<1x32xf32, #tpu.memory_space<vmem>>, %arg8: memref<32x128xbf16, #tpu.memory_space<vmem>>, %arg9: memref<1x128xf32, #tpu.memory_space<vmem>>, %arg10: memref<8x128xf32, #tpu.memory_space<vmem>>, %arg11: memref<2x8x32xbf16, #tpu.memory_space<vmem>>) attributes {dimension_semantics = [#tpu.dimension_semantics<parallel>, #tpu.dimension_semantics<arbitrary>, #tpu.dimension_semantics<arbitrary>], iteration_bounds = array<i64: 2, 2, 2>, scalar_prefetch = 0 : i64, scratch_operands = 1 : i64, tpu.core_type = #tpu.core_type<tc>, window_params = [{transform_indices = @transform_0, window_bounds = array<i64: 8, 32>}, {pipeline_mode = #tpu.pipeline_mode<synchronous>, transform_indices = @transform_1, window_bounds = array<i64: 32, 32>}, {pipeline_mode = #tpu.pipeline_mode<synchronous>, transform_indices = @transform_2, window_bounds = array<i64: 1, 32>}, {pipeline_mode = #tpu.pipeline_mode<synchronous>, transform_indices = @transform_3, window_bounds = array<i64: 1, 32>}, {pipeline_mode = #tpu.pipeline_mode<synchronous>, transform_indices = @transform_4, window_bounds = array<i64: 1, 32>}, {transform_indices = @transform_5, window_bounds = array<i64: 32, 128>}, {transform_indices = @transform_6, window_bounds = array<i64: 1, 128>}, {transform_indices = @transform_7, window_bounds = array<i64: 8, 128>}]} {
    %c0_i32 = arith.constant 0 : i32
    %0 = arith.cmpi eq, %arg1, %c0_i32 : i32
    %1 = arith.extui %0 : i1 to i32
    %c0_i32_0 = arith.constant 0 : i32
    %2 = arith.cmpi ne, %1, %c0_i32_0 : i32
    scf.if %2 {
      %c0_8 = arith.constant 0 : index
      %c0_9 = arith.constant 0 : index
      %12 = vector.load %arg3[%c0_8, %c0_9] : memref<8x32xf32, #tpu.memory_space<vmem>>, vector<8x32xf32>
      %c0_10 = arith.constant 0 : index
      %c0_11 = arith.constant 0 : index
      %13 = vector.load %arg4[%c0_10, %c0_11] : memref<32x32xf32, #tpu.memory_space<vmem>>, vector<32x32xf32>
      %cst_12 = arith.constant dense<0.000000e+00> : vector<8x32xf32>
      %14 = tpu.matmul %12, %13, %cst_12 {dimension_numbers = #tpu.dot_dimension_numbers<[1], [0], [0], [1], [0, 0, 1, 1], [], []>} : vector<8x32xf32>, vector<32x32xf32>, vector<8x32xf32> -> vector<8x32xf32>
      %c0_13 = arith.constant 0 : index
      %c0_14 = arith.constant 0 : index
      %15 = vector.load %arg5[%c0_13, %c0_14] : memref<1x32xf32, #tpu.memory_space<vmem>>, vector<1x32xf32>
      %16 = vector.broadcast %15 : vector<1x32xf32> to vector<8x32xf32>
      %17 = arith.addf %14, %16 : vector<8x32xf32>
      %18 = arith.mulf %17, %17 : vector<8x32xf32>
      %19 = arith.mulf %17, %18 : vector<8x32xf32>
      %cst_15 = arith.constant 4.471500e-02 : f32
      %20 = vector.broadcast %cst_15 : f32 to vector<8x32xf32>
      %21 = arith.mulf %20, %19 : vector<8x32xf32>
      %22 = arith.addf %17, %21 : vector<8x32xf32>
      %cst_16 = arith.constant 0.797884583 : f32
      %23 = vector.broadcast %cst_16 : f32 to vector<8x32xf32>
      %24 = arith.mulf %23, %22 : vector<8x32xf32>
      %25 = math.tanh %24 : vector<8x32xf32>
      %cst_17 = arith.constant 1.000000e+00 : f32
      %26 = vector.broadcast %cst_17 : f32 to vector<8x32xf32>
      %27 = arith.addf %26, %25 : vector<8x32xf32>
      %cst_18 = arith.constant 5.000000e-01 : f32
      %28 = vector.broadcast %cst_18 : f32 to vector<8x32xf32>
      %29 = arith.mulf %28, %27 : vector<8x32xf32>
      %30 = arith.mulf %17, %29 : vector<8x32xf32>
      %cst_19 = arith.constant dense<0.000000e+00> : vector<8xf32>
      %31 = vector.multi_reduction <add>, %30, %cst_19 [1] : vector<8x32xf32> to vector<8xf32>
      %32 = vector.shape_cast %31 : vector<8xf32> to vector<8x1xf32>
      %cst_20 = arith.constant 3.200000e+01 : f32
      %33 = vector.broadcast %cst_20 : f32 to vector<8x1xf32>
      %34 = arith.divf %32, %33 : vector<8x1xf32>
      %35 = vector.broadcast %34 : vector<8x1xf32> to vector<8x32xf32>
      %36 = arith.subf %30, %35 : vector<8x32xf32>
      %37 = arith.mulf %36, %36 : vector<8x32xf32>
      %cst_21 = arith.constant dense<0.000000e+00> : vector<8xf32>
      %38 = vector.multi_reduction <add>, %37, %cst_21 [1] : vector<8x32xf32> to vector<8xf32>
      %39 = vector.shape_cast %38 : vector<8xf32> to vector<8x1xf32>
      %cst_22 = arith.constant 3.200000e+01 : f32
      %40 = vector.broadcast %cst_22 : f32 to vector<8x1xf32>
      %41 = arith.divf %39, %40 : vector<8x1xf32>
      %42 = vector.broadcast %34 : vector<8x1xf32> to vector<8x32xf32>
      %43 = arith.subf %30, %42 : vector<8x32xf32>
      %cst_23 = arith.constant 9.99999974E-6 : f32
      %44 = vector.broadcast %cst_23 : f32 to vector<8x1xf32>
      %45 = arith.addf %41, %44 : vector<8x1xf32>
      %46 = math.rsqrt %45 : vector<8x1xf32>
      %47 = vector.broadcast %46 : vector<8x1xf32> to vector<8x32xf32>
      %48 = arith.mulf %43, %47 : vector<8x32xf32>
      %c0_24 = arith.constant 0 : index
      %c0_25 = arith.constant 0 : index
      %49 = vector.load %arg6[%c0_24, %c0_25] : memref<1x32xf32, #tpu.memory_space<vmem>>, vector<1x32xf32>
      %50 = vector.broadcast %49 : vector<1x32xf32> to vector<8x32xf32>
      %51 = arith.mulf %48, %50 : vector<8x32xf32>
      %c0_26 = arith.constant 0 : index
      %c0_27 = arith.constant 0 : index
      %52 = vector.load %arg7[%c0_26, %c0_27] : memref<1x32xf32, #tpu.memory_space<vmem>>, vector<1x32xf32>
      %53 = vector.broadcast %52 : vector<1x32xf32> to vector<8x32xf32>
      %54 = arith.addf %51, %53 : vector<8x32xf32>
      %55 = arith.truncf %54 : vector<8x32xf32> to vector<8x32xbf16>
      %56 = arith.index_cast %arg2 : i32 to index
      %c0_28 = arith.constant 0 : index
      %c0_29 = arith.constant 0 : index
      %57 = vector.load %arg11[%56, %c0_28, %c0_29] : memref<2x8x32xbf16, #tpu.memory_space<vmem>>, vector<1x8x32xbf16>
      %58 = vector.shape_cast %57 : vector<1x8x32xbf16> to vector<8x32xbf16>
      %59 = vector.shape_cast %55 : vector<8x32xbf16> to vector<1x8x32xbf16>
      tpu.vector_store %arg11[%56, %c0_28, %c0_29], %59 {strides = array<i32>} : memref<2x8x32xbf16, #tpu.memory_space<vmem>>, vector<1x8x32xbf16>,
    } else {
    }
    %3 = arith.index_cast %arg2 : i32 to index
    %c0 = arith.constant 0 : index
    %c0_1 = arith.constant 0 : index
    %4 = vector.load %arg11[%3, %c0, %c0_1] : memref<2x8x32xbf16, #tpu.memory_space<vmem>>, vector<1x8x32xbf16>
    %5 = vector.shape_cast %4 : vector<1x8x32xbf16> to vector<8x32xbf16>
    %c0_2 = arith.constant 0 : index
    %c0_3 = arith.constant 0 : index
    %6 = vector.load %arg8[%c0_2, %c0_3] : memref<32x128xbf16, #tpu.memory_space<vmem>>, vector<32x128xbf16>
    %cst = arith.constant dense<0.000000e+00> : vector<8x128xf32>
    %7 = tpu.matmul %5, %6, %cst {dimension_numbers = #tpu.dot_dimension_numbers<[1], [0], [0], [1], [0, 0, 1, 1], [], []>} : vector<8x32xbf16>, vector<32x128xbf16>, vector<8x128xf32> -> vector<8x128xf32>
    %c0_4 = arith.constant 0 : index
    %c0_5 = arith.constant 0 : index
    %8 = vector.load %arg9[%c0_4, %c0_5] : memref<1x128xf32, #tpu.memory_space<vmem>>, vector<1x128xf32>
    %9 = vector.broadcast %8 : vector<1x128xf32> to vector<8x128xf32>
    %10 = arith.addf %7, %9 : vector<8x128xf32>
    %c0_6 = arith.constant 0 : index
    %c0_7 = arith.constant 0 : index
    %11 = vector.load %arg10[%c0_6, %c0_7] : memref<8x128xf32, #tpu.memory_space<vmem>>, vector<8x128xf32>
    tpu.vector_store %arg10[%c0_6, %c0_7], %10 {strides = array<i32>} : memref<8x128xf32, #tpu.memory_space<vmem>>, vector<8x128xf32>,
    return
  }
  func.func @transform_0(%arg0: i32, %arg1: i32, %arg2: i32) -> (i32, i32) {
    %c0_i32 = arith.constant 0 : i32
    %0 = arith.cmpi eq, %arg1, %c0_i32 : i32
    %c2_i32 = arith.constant 2 : i32
    %1 = arith.muli %arg0, %c2_i32 : i32
    %2 = arith.addi %1, %arg2 : i32
    %c2_i32_0 = arith.constant 2 : i32
    %3 = arith.muli %arg0, %c2_i32_0 : i32
    %c1_i32 = arith.constant 1 : i32
    %4 = arith.addi %3, %c1_i32 : i32
    %5 = arith.select %0, %2, %4 : i32
    %c0_i32_1 = arith.constant 0 : i32
    %c0_i32_2 = arith.constant 0 : i32
    return %5, %c0_i32_1 : i32, i32
  }
  func.func @transform_1(%arg0: i32, %arg1: i32, %arg2: i32) -> (i32, i32) {
    %c0_i32 = arith.constant 0 : i32
    %c0_i32_0 = arith.constant 0 : i32
    %c0_i32_1 = arith.constant 0 : i32
    return %c0_i32, %c0_i32_0 : i32, i32
  }
  func.func @transform_2(%arg0: i32, %arg1: i32, %arg2: i32) -> (i32, i32) {
    %c0_i32 = arith.constant 0 : i32
    %c0_i32_0 = arith.constant 0 : i32
    %c0_i32_1 = arith.constant 0 : i32
    return %c0_i32, %c0_i32_0 : i32, i32
  }
  func.func @transform_3(%arg0: i32, %arg1: i32, %arg2: i32) -> (i32, i32) {
    %c0_i32 = arith.constant 0 : i32
    %c0_i32_0 = arith.constant 0 : i32
    %c0_i32_1 = arith.constant 0 : i32
    return %c0_i32, %c0_i32_0 : i32, i32
  }
  func.func @transform_4(%arg0: i32, %arg1: i32, %arg2: i32) -> (i32, i32) {
    %c0_i32 = arith.constant 0 : i32
    %c0_i32_0 = arith.constant 0 : i32
    %c0_i32_1 = arith.constant 0 : i32
    return %c0_i32, %c0_i32_0 : i32, i32
  }
  func.func @transform_5(%arg0: i32, %arg1: i32, %arg2: i32) -> (i32, i32) {
    %c0_i32 = arith.constant 0 : i32
    %c0_i32_0 = arith.constant 0 : i32
    return %c0_i32, %arg1 : i32, i32
  }
  func.func @transform_6(%arg0: i32, %arg1: i32, %arg2: i32) -> (i32, i32) {
    %c0_i32 = arith.constant 0 : i32
    %c0_i32_0 = arith.constant 0 : i32
    return %c0_i32, %arg1 : i32, i32
  }
  func.func @transform_7(%arg0: i32, %arg1: i32, %arg2: i32) -> (i32, i32) {
    %c2_i32 = arith.constant 2 : i32
    %0 = arith.muli %arg0, %c2_i32 : i32
    %1 = arith.addi %0, %arg2 : i32
    %c0_i32 = arith.constant 0 : i32
    return %1, %arg1 : i32, i32
  }
}

</mosaic_0001>

<llo_original>
// kernel: tpu_custom_call.1
$region0: #{tpu_custom_call.1}
  #allocation0 [shape = 'u32[]', space=smem, size = 0x4, offset = 0x4, fixed_abs, tag = 'smem constant byte address 0x4 - core index']
  #allocation1 [shape = 'u32[144,128]{1,0:T(1,128)}', space=vmem, size = 0x12000, scoped, tag = 'internal scratch']
  #allocation2 [shape = 'bf16[2,8,32]{2,1,0:T(8,128)(2,1)}', space=vmem, size = 0x1000, scoped, tag = 'scratch operand']
  %s0 = inlined_call_operand.hbm [shape: f32[32,32], index: 0, kind: input, shape index: {}]
  %s1 = inlined_call_operand.hbm [shape: f32[32,32], index: 1, kind: input, shape index: {}]
  %s2 = inlined_call_operand.vmem [shape: f32[1,32], index: 2, kind: input, shape index: {}]
  %s3 = inlined_call_operand.vmem [shape: f32[1,32], index: 3, kind: input, shape index: {}]
  %s4 = inlined_call_operand.vmem [shape: f32[1,32], index: 4, kind: input, shape index: {}]
  %s5 = inlined_call_operand.hbm [shape: bf16[32,256], index: 5, kind: input, shape index: {}]
  %s6 = inlined_call_operand.vmem [shape: f32[1,256], index: 6, kind: input, shape index: {}]
  %s7 = inlined_call_operand.hbm [shape: f32[32,256], index: 7, kind: output, shape index: {}]
  %s8 = sld [smem:[#allocation0]]
  $region77: #{tpu_custom_call.1} parent=0
    _
  %s10 = ssub.s32 1, %s8
  %s11 = scalar_select 0, %s10, %s8
  $region1: #{tpu_custom_call.1} parent=0
    #allocation3 [shape = 'u8[8192]{0}', space=vmem, size = 0x2000, scoped, tag = 'input window, operand 0']
    #allocation4 [shape = 's32[2]{0}', space=sflag, size = 0x8, scoped, tag = 'scoped memory for tpu_custom_call.1']
    #allocation5 [shape = 's32[2]{0}', space=sflag, size = 0x8, scoped, tag = 'scoped memory for tpu_custom_call.1']
    #allocation6 [shape = 'u8[16384]{0}', space=vmem, size = 0x4000, scoped, tag = 'input window, operand 1, single buffered']
    #allocation7 [shape = 's32[1]{0}', space=sflag, size = 0x4, scoped, tag = 'scoped memory for tpu_custom_call.1']
    #allocation8 [shape = 'u8[16384]{0}', space=vmem, size = 0x4000, scoped, tag = 'input window, operand 5']
    #allocation9 [shape = 'u8[8192]{0}', space=vmem, size = 0x2000, scoped, tag = 'output window, operand 0']
    %12 = vsyncpa [#allocation4], 0
    %s13 = scalar_lea.sflag [#allocation4], 1
    %14 = vsyncpa %s13, 0
    %15 = vsyncpa [#allocation7], 0
    %16 = vsyncpa [#allocation5], 0
    %s17 = scalar_lea.sflag [#allocation5], 1
    %18 = vsyncpa %s17, 0
    loop: start=0, step=1, limit=10
    $region2: #{tpu_custom_call.1} parent=1 // loop_pre_header
      _
    $region3: #{tpu_custom_call.1} parent=1 // loop_header
      %s20 = sphi 0, %s24
      %p21 = scmp.ge.s32.totalorder %s20, 10
      %s27 = sphi 0, %s46
      %s28 = sphi 0, %s42
      %s29 = sphi 0, %s38
      %s30 = sphi 0, %s27
      %s31 = sphi 0, %s28
      %s32 = sphi 0, %s29
      %s33 = sphi 0, %s30
      %s34 = sphi 0, %s31
      %s35 = sphi 0, %s32
      %s59 = sphi 0, %s61
      %s62 = sphi 0, %s59
      %s63 = sphi 0, %s62
      %s79 = sphi 0, %s63
      %s83 = sphi 0, %s83
      %s85 = sphi 0, %s83
      %s86 = sphi 0, %s85
      %s100 = sphi 0, %s86
      %s104 = sphi 0, %s104
      %s106 = sphi 0, %s104
      %s107 = sphi 0, %s106
      %s121 = sphi 0, %s107
      %s125 = sphi 0, %s125
      %s127 = sphi 0, %s125
      %s128 = sphi 0, %s127
      %s142 = sphi 0, %s128
      %s146 = sphi 0, %s146
      %s148 = sphi 0, %s146
      %s149 = sphi 0, %s148
      %s163 = sphi 0, %s149
      %s169 = sphi 0, %s171
      %s172 = sphi 0, %s169
      %s173 = sphi 0, %s172
      %s189 = sphi 0, %s173
      %s195 = sphi 0, %s197
      %s198 = sphi 0, %s195
      %s199 = sphi 0, %s198
      %s215 = sphi 0, %s199
      %s227 = sphi 0, %s229
      %s230 = sphi 0, %s227
      %s231 = sphi 0, %s230
      %s247 = sphi 0, %s231
    $region4: #{tpu_custom_call.1} parent=1 // loop_header_branch
      %23 = sbr.rel (%p21) target = $region8
    $region5: #{tpu_custom_call.1} parent=1 // loop_body
      %s25 = ssub.s32 %s20, 1
      %s26 = ssub.s32 %s20, 2
      %s36 = sadd.s32 1, %s29
      %p37 = scmp.ge.s32.totalorder %s36, 2
      %s38 = scalar_select %p37, 0, %s36
      %s39 = sadd.s32 1, %s28
      %s40 = scalar_select %p37, %s39, %s28
      %p41 = scmp.ge.s32.totalorder %s40, 2
      %s42 = scalar_select %p41, 0, %s40
      %s43 = sadd.s32 1, %s27
      %s44 = scalar_select %p41, %s43, %s27
      %p45 = scmp.ge.s32.totalorder %s44, 2
      %s46 = scalar_select %p45, 0, %s44
      %p47 = scmp.eq.s32.totalorder %s28, 0
      %s48 = smul.u32 %s27, 2
      %s49 = sadd.s32 %s48, %s29
      %s50 = sadd.s32 %s48, 1
      %s51 = scalar_select %p47, %s49, %s50
      %p52 = scmp.eq.s32.totalorder %s42, 0
      %s53 = smul.u32 %s46, 2
      %s54 = sadd.s32 %s53, %s38
      %s55 = sadd.s32 %s53, 1
      %s56 = scalar_select %p52, %s54, %s55
      %s57 = ssub.s32 %s51, %s56
      %p58 = scmp.eq.s32.totalorder %s57, 0
      %s60 = sadd.s32 %s59, 1
      %s61 = scalar_select %p58, %s59, %s60
      %p64 = pneg %p58
      %p65 = scmp.eq.s32.totalorder %s20, 7
      %p66 = por %p64, %p65
      %p67 = scmp.ne.s32.totalorder %s59, %s62
      %p68 = scmp.eq.s32.totalorder %s20, 0
      %p69 = por %p67, %p68
      %p70 = scmp.ne.s32.totalorder %s59, %s62
      %p71 = scmp.eq.s32.totalorder %s25, 7
      %p72 = por %p70, %p71
      %p73 = scmp.ne.s32.totalorder %s62, %s63
      %p74 = scmp.eq.s32.totalorder %s25, 0
      %p75 = por %p73, %p74
      %p76 = scmp.ne.s32.totalorder %s62, %s63
      %p77 = scmp.eq.s32.totalorder %s26, 7
      %p78 = por %p76, %p77
      %p80 = scmp.ne.s32.totalorder %s63, %s79
      %p81 = scmp.eq.s32.totalorder %s26, 0
      %p82 = por %p80, %p81
      %s84 = sadd.s32 %s83, 1
      %p87 = scmp.eq.s32.totalorder %s20, 7
      %p88 = scmp.ne.s32.totalorder %s83, %s85
      %p89 = scmp.eq.s32.totalorder %s20, 0
      %p90 = por %p88, %p89
      %p91 = scmp.ne.s32.totalorder %s83, %s85
      %p92 = scmp.eq.s32.totalorder %s25, 7
      %p93 = por %p91, %p92
      %p94 = scmp.ne.s32.totalorder %s85, %s86
      %p95 = scmp.eq.s32.totalorder %s25, 0
      %p96 = por %p94, %p95
      %p97 = scmp.ne.s32.totalorder %s85, %s86
      %p98 = scmp.eq.s32.totalorder %s26, 7
      %p99 = por %p97, %p98
      %p101 = scmp.ne.s32.totalorder %s86, %s100
      %p102 = scmp.eq.s32.totalorder %s26, 0
      %p103 = por %p101, %p102
      %s105 = sadd.s32 %s104, 1
      %p108 = scmp.eq.s32.totalorder %s20, 7
      %p109 = scmp.ne.s32.totalorder %s104, %s106
      %p110 = scmp.eq.s32.totalorder %s20, 0
      %p111 = por %p109, %p110
      %p112 = scmp.ne.s32.totalorder %s104, %s106
      %p113 = scmp.eq.s32.totalorder %s25, 7
      %p114 = por %p112, %p113
      %p115 = scmp.ne.s32.totalorder %s106, %s107
      %p116 = scmp.eq.s32.totalorder %s25, 0
      %p117 = por %p115, %p116
      %p118 = scmp.ne.s32.totalorder %s106, %s107
      %p119 = scmp.eq.s32.totalorder %s26, 7
      %p120 = por %p118, %p119
      %p122 = scmp.ne.s32.totalorder %s107, %s121
      %p123 = scmp.eq.s32.totalorder %s26, 0
      %p124 = por %p122, %p123
      %s126 = sadd.s32 %s125, 1
      %p129 = scmp.eq.s32.totalorder %s20, 7
      %p130 = scmp.ne.s32.totalorder %s125, %s127
      %p131 = scmp.eq.s32.totalorder %s20, 0
      %p132 = por %p130, %p131
      %p133 = scmp.ne.s32.totalorder %s125, %s127
      %p134 = scmp.eq.s32.totalorder %s25, 7
      %p135 = por %p133, %p134
      %p136 = scmp.ne.s32.totalorder %s127, %s128
      %p137 = scmp.eq.s32.totalorder %s25, 0
      %p138 = por %p136, %p137
      %p139 = scmp.ne.s32.totalorder %s127, %s128
      %p140 = scmp.eq.s32.totalorder %s26, 7
      %p141 = por %p139, %p140
      %p143 = scmp.ne.s32.totalorder %s128, %s142
      %p144 = scmp.eq.s32.totalorder %s26, 0
      %p145 = por %p143, %p144
      %s147 = sadd.s32 %s146, 1
      %p150 = scmp.eq.s32.totalorder %s20, 7
      %p151 = scmp.ne.s32.totalorder %s146, %s148
      %p152 = scmp.eq.s32.totalorder %s20, 0
      %p153 = por %p151, %p152
      %p154 = scmp.ne.s32.totalorder %s146, %s148
      %p155 = scmp.eq.s32.totalorder %s25, 7
      %p156 = por %p154, %p155
      %p157 = scmp.ne.s32.totalorder %s148, %s149
      %p158 = scmp.eq.s32.totalorder %s25, 0
      %p159 = por %p157, %p158
      %p160 = scmp.ne.s32.totalorder %s148, %s149
      %p161 = scmp.eq.s32.totalorder %s26, 7
      %p162 = por %p160, %p161
      %p164 = scmp.ne.s32.totalorder %s149, %s163
      %p165 = scmp.eq.s32.totalorder %s26, 0
      %p166 = por %p164, %p165
      %s167 = ssub.s32 %s28, %s42
      %p168 = scmp.eq.s32.totalorder %s167, 0
      %s170 = sadd.s32 %s169, 1
      %s171 = scalar_select %p168, %s169, %s170
      %p174 = pneg %p168
      %p175 = scmp.eq.s32.totalorder %s20, 7
      %p176 = por %p174, %p175
      %p177 = scmp.ne.s32.totalorder %s169, %s172
      %p178 = scmp.eq.s32.totalorder %s20, 0
      %p179 = por %p177, %p178
      %p180 = scmp.ne.s32.totalorder %s169, %s172
      %p181 = scmp.eq.s32.totalorder %s25, 7
      %p182 = por %p180, %p181
      %p183 = scmp.ne.s32.totalorder %s172, %s173
      %p184 = scmp.eq.s32.totalorder %s25, 0
      %p185 = por %p183, %p184
      %p186 = scmp.ne.s32.totalorder %s172, %s173
      %p187 = scmp.eq.s32.totalorder %s26, 7
      %p188 = por %p186, %p187
      %p190 = scmp.ne.s32.totalorder %s173, %s189
      %p191 = scmp.eq.s32.totalorder %s26, 0
      %p192 = por %p190, %p191
      %s193 = ssub.s32 %s28, %s42
      %p194 = scmp.eq.s32.totalorder %s193, 0
      %s196 = sadd.s32 %s195, 1
      %s197 = scalar_select %p194, %s195, %s196
      %p200 = pneg %p194
      %p201 = scmp.eq.s32.totalorder %s20, 7
      %p202 = por %p200, %p201
      %p203 = scmp.ne.s32.totalorder %s195, %s198
      %p204 = scmp.eq.s32.totalorder %s20, 0
      %p205 = por %p203, %p204
      %p206 = scmp.ne.s32.totalorder %s195, %s198
      %p207 = scmp.eq.s32.totalorder %s25, 7
      %p208 = por %p206, %p207
      %p209 = scmp.ne.s32.totalorder %s198, %s199
      %p210 = scmp.eq.s32.totalorder %s25, 0
      %p211 = por %p209, %p210
      %p212 = scmp.ne.s32.totalorder %s198, %s199
      %p213 = scmp.eq.s32.totalorder %s26, 7
      %p214 = por %p212, %p213
      %p216 = scmp.ne.s32.totalorder %s199, %s215
      %p217 = scmp.eq.s32.totalorder %s26, 0
      %p218 = por %p216, %p217
      %s219 = smul.u32 %s27, 2
      %s220 = sadd.s32 %s219, %s29
      %s221 = smul.u32 %s46, 2
      %s222 = sadd.s32 %s221, %s38
      %s223 = ssub.s32 %s220, %s222
      %s224 = ssub.s32 %s28, %s42
      %s225 = sor.u32 %s223, %s224
      %p226 = scmp.eq.s32.totalorder %s225, 0
      %s228 = sadd.s32 %s227, 1
      %s229 = scalar_select %p226, %s227, %s228
      %p232 = pneg %p226
      %p233 = scmp.eq.s32.totalorder %s20, 7
      %p234 = por %p232, %p233
      %p235 = scmp.ne.s32.totalorder %s227, %s230
      %p236 = scmp.eq.s32.totalorder %s20, 0
      %p237 = por %p235, %p236
      %p238 = scmp.ne.s32.totalorder %s227, %s230
      %p239 = scmp.eq.s32.totalorder %s25, 7
      %p240 = por %p238, %p239
      %p241 = scmp.ne.s32.totalorder %s230, %s231
      %p242 = scmp.eq.s32.totalorder %s25, 0
      %p243 = por %p241, %p242
      %p244 = scmp.ne.s32.totalorder %s230, %s231
      %p245 = scmp.eq.s32.totalorder %s26, 7
      %p246 = por %p244, %p245
      %p248 = scmp.ne.s32.totalorder %s231, %s247
      %p249 = scmp.eq.s32.totalorder %s26, 0
      %p250 = por %p248, %p249
      %p251 = scmp.le.s32.totalorder 1, %s20
      %p252 = scmp.lt.s32.totalorder %s20, 9
      %p253 = pnand %p251, %p252
      %p254 = pneg %p253
      // Predicated region
      $region9: #{tpu_custom_call.1} parent=5 // pred_check
        _
      $region10: #{tpu_custom_call.1} parent=5 // pred_check_branch
        %256 = sbr.rel (%p253) target = $region12
      $region11: #{tpu_custom_call.1} parent=5 // pred_region
        %s257 = ssub.s32 %s20, 1
        // Predicated region
        $region13: #{tpu_custom_call.1} parent=11 // pred_check
          %p258 = pneg %p96
        $region14: #{tpu_custom_call.1} parent=11 // pred_check_branch
          %260 = sbr.rel (%p258) target = $region16
        $region15: #{tpu_custom_call.1} parent=11 // pred_region
          %s262 = ssub.s32 512, 512
          %263 = vsyncadd [#allocation7], %s262
          %s264 = sshll.u32 [#allocation6], 4
          %s265 = int_to_ptr.vmem [resolvable:$true] %s264
          %270 = dma.hbm_to_vmem [thread:$0]  %s1, 512, %s265, [#allocation7], 128, 128, 8
        $region16: #{tpu_custom_call.1} parent=11 // pred_fallthru
          _
        // Predicated region
        $region17: #{tpu_custom_call.1} parent=11 // pred_check
          %p271 = pneg %p117
        $region18: #{tpu_custom_call.1} parent=11 // pred_check_branch
          %273 = sbr.rel (%p271) target = $region20
        $region19: #{tpu_custom_call.1} parent=11 // pred_region
          _
        $region20: #{tpu_custom_call.1} parent=11 // pred_fallthru
          _
        // Predicated region
        $region21: #{tpu_custom_call.1} parent=11 // pred_check
          %p274 = pneg %p138
        $region22: #{tpu_custom_call.1} parent=11 // pred_check_branch
          %276 = sbr.rel (%p274) target = $region24
        $region23: #{tpu_custom_call.1} parent=11 // pred_region
          _
        $region24: #{tpu_custom_call.1} parent=11 // pred_fallthru
          _
        // Predicated region
        $region25: #{tpu_custom_call.1} parent=11 // pred_check
          %p277 = pneg %p159
        $region26: #{tpu_custom_call.1} parent=11 // pred_check_branch
          %279 = sbr.rel (%p277) target = $region28
        $region27: #{tpu_custom_call.1} parent=11 // pred_region
          _
        $region28: #{tpu_custom_call.1} parent=11 // pred_fallthru
          _
      $region12: #{tpu_custom_call.1} parent=5 // pred_fallthru
        _
      %p280 = scmp.lt.s32.totalorder %s20, 8
      // Predicated region
      $region29: #{tpu_custom_call.1} parent=5 // pred_check
        %p281 = pneg %p280
      $region30: #{tpu_custom_call.1} parent=5 // pred_check_branch
        %283 = sbr.rel (%p281) target = $region32
      $region31: #{tpu_custom_call.1} parent=5 // pred_region
        // Predicated region
        $region33: #{tpu_custom_call.1} parent=31 // pred_check
          %p284 = pneg %p69
        $region34: #{tpu_custom_call.1} parent=31 // pred_check_branch
          %286 = sbr.rel (%p284) target = $region36
        $region35: #{tpu_custom_call.1} parent=31 // pred_region
          %s287 = sand.u32 %s20, 1
          %s288 = scalar_lea.sflag [#allocation4], %s287
          %s289 = sand.u32 %s59, 1
          %s290 = smul.addr %s289, 8
          %s291 = scalar_lea.vmem [#allocation3], %s290
          %p292 = scmp.eq.s32.totalorder %s28, 0
          %s293 = smul.u32 %s27, 2
          %s294 = sadd.s32 %s293, %s29
          %s295 = sadd.s32 %s293, 1
          %s296 = scalar_select %p292, %s294, %s295
          %s298 = ssub.s32 128, 128
          %299 = vsyncadd %s288, %s298
          %s300 = smul.addr %s296, 128
          %s301 = scalar_lea.hbm %s0, %s300
          %s303 = sshll.u32 %s291, 4
          %s304 = int_to_ptr.vmem [resolvable:$true] %s303
          %306 = dma.hbm_to_vmem [thread:$0]  %s301, 128, %s304, %s288
        $region36: #{tpu_custom_call.1} parent=31 // pred_fallthru
          _
        // Predicated region
        $region37: #{tpu_custom_call.1} parent=31 // pred_check
          %p307 = pneg %p179
        $region38: #{tpu_custom_call.1} parent=31 // pred_check_branch
          %309 = sbr.rel (%p307) target = $region40
        $region39: #{tpu_custom_call.1} parent=31 // pred_region
          %s310 = sand.u32 %s20, 1
          %s311 = scalar_lea.sflag [#allocation4], %s310
          %s312 = sand.u32 %s169, 1
          %s313 = smul.addr %s312, 16
          %s314 = scalar_lea.vmem [#allocation8], %s313
          %s316 = ssub.s32 256, 256
          %317 = vsyncadd %s311, %s316
          %s318 = smul.addr %s28, 64
          %s319 = scalar_lea.hbm %s5, %s318
          %s320 = sshll.u32 %s314, 4
          %s321 = int_to_ptr.vmem [resolvable:$true] %s320
          %326 = dma.hbm_to_vmem [thread:$0]  %s319, 256, %s321, %s311, 128, 64, 4
        $region40: #{tpu_custom_call.1} parent=31 // pred_fallthru
          _
        // Predicated region
        $region41: #{tpu_custom_call.1} parent=31 // pred_check
          %p327 = pneg %p205
        $region42: #{tpu_custom_call.1} parent=31 // pred_check_branch
          %329 = sbr.rel (%p327) target = $region44
        $region43: #{tpu_custom_call.1} parent=31 // pred_region
          %p330 = scmp.lt.s32.totalorder %s28, 1
          %s331 = scalar_select %p330, %s28, 1
          %s332 = scalar_lea.vmem %s6, %s331
        $region44: #{tpu_custom_call.1} parent=31 // pred_fallthru
          _
      $region32: #{tpu_custom_call.1} parent=5 // pred_fallthru
        _
      %p333 = scmp.le.s32.totalorder 1, %s20
      %p334 = scmp.lt.s32.totalorder %s20, 9
      %p335 = pnand %p333, %p334
      %p336 = pneg %p335
      // Predicated region
      $region45: #{tpu_custom_call.1} parent=5 // pred_check
        _
      $region46: #{tpu_custom_call.1} parent=5 // pred_check_branch
        %338 = sbr.rel (%p335) target = $region48
      $region47: #{tpu_custom_call.1} parent=5 // pred_region
        %s339 = ssub.s32 %s20, 1
        %s340 = sand.u32 %s25, 1
        %s341 = scalar_lea.sflag [#allocation4], %s340
        %s342 = sand.u32 %s62, 1
        %s343 = smul.addr %s342, 8
        %s344 = scalar_lea.vmem [#allocation3], %s343
        // Predicated region
        $region49: #{tpu_custom_call.1} parent=47 // pred_check
          %p345 = pneg %p75
        $region50: #{tpu_custom_call.1} parent=47 // pred_check_branch
          %347 = sbr.rel (%p345) target = $region52
        $region51: #{tpu_custom_call.1} parent=47 // pred_region
          %348 = dma.done %s341, 128
        $region52: #{tpu_custom_call.1} parent=47 // pred_fallthru
          _
        // Predicated region
        $region53: #{tpu_custom_call.1} parent=47 // pred_check
          %p349 = pneg %p96
        $region54: #{tpu_custom_call.1} parent=47 // pred_check_branch
          %351 = sbr.rel (%p349) target = $region56
        $region55: #{tpu_custom_call.1} parent=47 // pred_region
          %352 = dma.done [#allocation7], 512
        $region56: #{tpu_custom_call.1} parent=47 // pred_fallthru
          _
        %s353 = sand.u32 %s25, 1
        %s354 = scalar_lea.sflag [#allocation4], %s353
        %s355 = sand.u32 %s172, 1
        %s356 = smul.addr %s355, 16
        %s357 = scalar_lea.vmem [#allocation8], %s356
        // Predicated region
        $region57: #{tpu_custom_call.1} parent=47 // pred_check
          %p358 = pneg %p185
        $region58: #{tpu_custom_call.1} parent=47 // pred_check_branch
          %360 = sbr.rel (%p358) target = $region60
        $region59: #{tpu_custom_call.1} parent=47 // pred_region
          %361 = dma.done %s354, 256
        $region60: #{tpu_custom_call.1} parent=47 // pred_fallthru
          _
        %s362 = sand.u32 %s25, 1
        %s363 = scalar_lea.sflag [#allocation4], %s362
        %s364 = sand.u32 %s62, 1
        %s365 = smul.addr %s364, 8
        %s366 = scalar_lea.vmem [#allocation3], %s365
        %p367 = pneg %p75
        %p368 = pneg %p72
        %p369 = pneg %p96
        %p370 = pneg %p93
        %p371 = pneg %p117
        %p372 = pneg %p114
        %p373 = pneg %p138
        %p374 = pneg %p135
        %p375 = pneg %p159
        %p376 = pneg %p156
        %s377 = sand.u32 %s25, 1
        %s378 = scalar_lea.sflag [#allocation4], %s377
        %s379 = sand.u32 %s172, 1
        %s380 = smul.addr %s379, 16
        %s381 = scalar_lea.vmem [#allocation8], %s380
        %p382 = pneg %p185
        %p383 = pneg %p182
        %p384 = scmp.lt.s32.totalorder %s31, 1
        %s385 = scalar_select %p384, %s31, 1
        %s386 = scalar_lea.vmem %s6, %s385
        %p387 = pneg %p211
        %p388 = pneg %p208
        %p389 = pneg %p243
        %p390 = pneg %p240
        %s391 = sand.u32 %s230, 1
        %s392 = scalar_lea.sflag [#allocation5], %s391
        %s393 = sand.u32 %s230, 1
        %s394 = smul.addr %s393, 8
        %s395 = scalar_lea.vmem [#allocation9], %s394
        %p396 = scmp.eq.s32.totalorder %s31, 0
        %s397 = smul.u32 %s30, 2
        %s398 = sadd.s32 %s397, %s32
        %s399 = sadd.s32 %s397, 1
        %s400 = scalar_select %p396, %s398, %s399
        %p401 = scmp.lt.s32.totalorder %s31, 1
        %s402 = scalar_select %p401, %s31, 1
        %s403 = scalar_lea.vmem %s6, %s402
        %s404 = smul.u32 %s30, 2
        %s405 = sadd.s32 %s404, %s32
        %p407 = scmp.eq.s32.totalorder %s31, 0
        // Predicated region
        $region61: #{tpu_custom_call.1} parent=47 // pred_check
          %p408 = pneg %p407
        $region62: #{tpu_custom_call.1} parent=47 // pred_check_branch
          %410 = sbr.rel (%p408) target = $region64
        $region63: #{tpu_custom_call.1} parent=47 // pred_region
          %v411 = vld [vmem:[%s344] sm:$0xff]
          %v412 = vld [vmem:[#allocation6] sm:$0xff]
          %v413 = vld [vmem:[#allocation6 + $0x8] sm:$0xff]
          %v414 = vld [vmem:[#allocation6 + $0x10] sm:$0xff]
          %v415 = vld [vmem:[#allocation6 + $0x18] sm:$0xff]
          %v416 = vld [vmem:[%s2] sm:$0x1]
          %v418 = vlaneseq
          %v419 = vshrl.u32 %v418, 7
          %v420 = vsub.s32 0, %v419
          %v421 = vrot.slane %v416, %v420
          %vm423 = vcmask 261120
          %v425 = vsel %vm423, %v411, 0
          %427 = vmatprep.subr.mxu0 0.0
          %428 = vmatpush1.msra.mxu0 0.0
          %429 = vmatprep.subr.mxu0 0.0
          %430 = vmatpush1.msra.mxu0 0.0
          %431 = vmatprep.subr.mxu0 0.0
          %432 = vmatpush1.msra.mxu0 0.0
          %433 = vmatprep.subr.mxu0 0.0
          %434 = vmatpush1.msra.mxu0 0.0
          %435 = vmatprep.subr.mxu0 0.0
          %436 = vmatpush1.msra.mxu0 0.0
          %437 = vmatprep.subr.mxu0 0.0
          %438 = vmatpush1.msra.mxu0 0.0
          %439 = vmatprep.subr.mxu0 0.0
          %440 = vmatpush1.msra.mxu0 0.0
          %441 = vmatprep.subr.mxu0 0.0
          %442 = vmatpush1.msra.mxu0 0.0
          %443 = vmatprep.subr.mxu0 0.0
          %444 = vmatpush1.msra.mxu0 0.0
          %445 = vmatprep.subr.mxu0 0.0
          %446 = vmatpush1.msra.mxu0 0.0
          %447 = vmatprep.subr.mxu0 0.0
          %448 = vmatpush1.msra.mxu0 0.0
          %449 = vmatprep.subr.mxu0 0.0
          %450 = vmatpush1.msra.mxu0 0.0
          %451 = vmatprep.subr.mxu0 0.0
          %452 = vmatpush1.msra.mxu0 %v415
          %453 = vmatprep.subr.mxu0 0.0
          %454 = vmatpush1.msra.mxu0 %v414
          %455 = vmatprep.subr.mxu0 0.0
          %456 = vmatpush1.msra.mxu0 %v413
          %457 = vmatprep.subr.mxu0 0.0
          %458 = vmatpush1.msra.mxu0 %v412
          %459 = vmatprep.subr.mxu0 0.0
          %460 = vmatpush2.msra.mxu0 0.0
          %461 = vmatprep.subr.mxu0 0.0
          %462 = vmatpush2.msra.mxu0 0.0
          %463 = vmatprep.subr.mxu0 0.0
          %464 = vmatpush2.msra.mxu0 0.0
          %465 = vmatprep.subr.mxu0 0.0
          %466 = vmatpush2.msra.mxu0 0.0
          %467 = vmatprep.subr.mxu0 0.0
          %468 = vmatpush2.msra.mxu0 0.0
          %469 = vmatprep.subr.mxu0 0.0
          %470 = vmatpush2.msra.mxu0 0.0
          %471 = vmatprep.subr.mxu0 0.0
          %472 = vmatpush2.msra.mxu0 0.0
          %473 = vmatprep.subr.mxu0 0.0
          %474 = vmatpush2.msra.mxu0 0.0
          %475 = vmatprep.subr.mxu0 0.0
          %476 = vmatpush2.msra.mxu0 0.0
          %477 = vmatprep.subr.mxu0 0.0
          %478 = vmatpush2.msra.mxu0 0.0
          %479 = vmatprep.subr.mxu0 0.0
          %480 = vmatpush2.msra.mxu0 0.0
          %481 = vmatprep.subr.mxu0 0.0
          %482 = vmatpush2.msra.mxu0 0.0
          %483 = vmatprep.subr.mxu0 0.0
          %484 = vmatpush2.msra.mxu0 0.0
          %485 = vmatprep.subr.mxu0 0.0
          %486 = vmatpush2.msra.mxu0 0.0
          %487 = vmatprep.subr.mxu0 0.0
          %488 = vmatpush2.msra.mxu0 0.0
          %489 = vmatprep.subr.mxu0 0.0
          %490 = vmatpush2.msra.mxu0 0.0
          %491 = vmatprep.mubr.f32.mxu0 0.0
          %492 = vmatmul.mubr.f32.gmra.mxu0 %v425
          %v493 = vpop.f32.mrf.mxu0
          %v494 = vadd.f32 %v421, %v493
          %v495 = vpop.f32.mrf.mxu0
          %496 = vdwg.mxu0
          %v497 = vmul.f32 %v494, %v494
          %v498 = vmul.f32 %v494, %v497
          %v499 = vmul.f32 %v498, 0.044715
          %v500 = vadd.f32 %v494, %v499
          %v501 = vmul.f32 %v500, 0.7978846
          %v502 = vtanh.pop %v501
          %v503 = vadd.f32 %v502, 1.0
          %v504 = vmul.f32 %v503, 0.5
          %v505 = vmul.f32 %v494, %v504
          %v506 = vsel %vm423, %v505, 0.0
          %507 = vadd.xlane.f32.xlu0 %v506
          %v508 = vpop.xlane.xlu0 %507
          %v509 = vrcp.pop 32.0
          %v510 = vmul.f32 %v508, %v509
          %v511 = vsub.f32 %v505, %v510
          %v512 = vmul.f32 %v511, %v511
          %v513 = vsel %vm423, %v512, 0.0
          %514 = vadd.xlane.f32.xlu0 %v513
          %v515 = vpop.xlane.xlu0 %514
          %v516 = vmul.f32 %v515, %v509
          %v517 = vadd.f32 %v516, 1e-05
          %v518 = vrsqrt.pop %v517
          %v519 = vmul.f32 %v511, %v518
          %v520 = vld [vmem:[%s3] sm:$0x1]
          %v522 = vlaneseq
          %v523 = vshrl.u32 %v522, 7
          %v524 = vsub.s32 0, %v523
          %v525 = vrot.slane %v520, %v524
          %v527 = vmul.f32 %v519, %v525
          %v528 = vld [vmem:[%s4] sm:$0x1]
          %v530 = vlaneseq
          %v531 = vshrl.u32 %v530, 7
          %v532 = vsub.s32 0, %v531
          %v533 = vrot.slane %v528, %v532
          %v535 = vadd.f32 %v527, %v533
          %v536 = vpack.c.bf16 %v535, %v535
          %s537 = smul.addr %s32, 4
          %s538 = scalar_lea.vmem [#allocation2], %s537
          %vm539 = vcmask 257024
          %540 = vst.msk [vmem:[%s538] sm:$0xf] %vm539, %v536
        $region64: #{tpu_custom_call.1} parent=47 // pred_fallthru
          _
        %s541 = smul.addr %s32, 4
        %s542 = scalar_lea.vmem [#allocation2], %s541
        %v543 = vld [vmem:[%s542] sm:$0xf]
        %v544 = vld [vmem:[%s357] sm:$0xf]
        %v545 = vld [vmem:[%s357 + $0x4] sm:$0xf]
        %v546 = vld [vmem:[%s357 + $0x8] sm:$0xf]
        %v547 = vld [vmem:[%s357 + $0xc] sm:$0xf]
        %v548 = vld [vmem:[%s403] sm:$0x1]
        %v550 = vlaneseq
        %v551 = vshrl.u32 %v550, 7
        %v552 = vsub.s32 0, %v551
        %v553 = vrot.slane %v548, %v552
        %v559 = vunpack.c.l.b16 %v544
        %v560 = vunpack.c.l.b16 %v545
        %v561 = vunpack.c.l.b16 %v546
        %v562 = vunpack.c.l.b16 %v547
        %v563 = vpack.c.b16 %v560, %v559
        %v564 = vpack.c.b16 %v562, %v561
        %vm567 = vcmask 261120
        %v569 = vsel %vm567, %v543, 0
        %571 = vmatprep.subr.bf16.mxu0 0
        %572 = vmatpush1.bf16.msra.mxu0 0
        %573 = vmatprep.subr.bf16.mxu0 0
        %574 = vmatpush1.bf16.msra.mxu0 0
        %575 = vmatprep.subr.bf16.mxu0 0
        %576 = vmatpush1.bf16.msra.mxu0 0
        %577 = vmatprep.subr.bf16.mxu0 0
        %578 = vmatpush1.bf16.msra.mxu0 0
        %579 = vmatprep.subr.bf16.mxu0 0
        %580 = vmatpush1.bf16.msra.mxu0 0
        %581 = vmatprep.subr.bf16.mxu0 0
        %582 = vmatpush1.bf16.msra.mxu0 0
        %583 = vmatprep.subr.bf16.mxu0 0
        %584 = vmatpush1.bf16.msra.mxu0 %v564
        %585 = vmatprep.subr.bf16.mxu0 0
        %586 = vmatpush1.bf16.msra.mxu0 %v563
        %587 = vmatprep.subr.bf16.mxu0 0
        %588 = vmatpush2.bf16.msra.mxu0 0
        %589 = vmatprep.subr.bf16.mxu0 0
        %590 = vmatpush2.bf16.msra.mxu0 0
        %591 = vmatprep.subr.bf16.mxu0 0
        %592 = vmatpush2.bf16.msra.mxu0 0
        %593 = vmatprep.subr.bf16.mxu0 0
        %594 = vmatpush2.bf16.msra.mxu0 0
        %595 = vmatprep.subr.bf16.mxu0 0
        %596 = vmatpush2.bf16.msra.mxu0 0
        %597 = vmatprep.subr.bf16.mxu0 0
        %598 = vmatpush2.bf16.msra.mxu0 0
        %599 = vmatprep.subr.bf16.mxu0 0
        %600 = vmatpush2.bf16.msra.mxu0 0
        %601 = vmatprep.subr.bf16.mxu0 0
        %602 = vmatpush2.bf16.msra.mxu0 0
        %603 = vmatprep.mubr.bf16.mxu0 0
        %604 = vmatmul.mubr.bf16.gmra.mxu0 %v569
        %v605 = vpop.f32.mrf.mxu0
        %v606 = vadd.f32 %v553, %v605
        %v607 = vpop.f32.mrf.mxu0
        %v608 = vpop.f32.mrf.mxu0
        %v609 = vpop.f32.mrf.mxu0
        %610 = vdwg.mxu0
        %611 = vst [vmem:[%s395] sm:$0xff] %v606
        %s612 = sand.u32 %s230, 1
        %s613 = scalar_lea.sflag [#allocation5], %s612
        %s614 = sand.u32 %s230, 1
        %s615 = smul.addr %s614, 8
        %s616 = scalar_lea.vmem [#allocation9], %s615
        // Predicated region
        $region65: #{tpu_custom_call.1} parent=47 // pred_check
          %p617 = pneg %p240
        $region66: #{tpu_custom_call.1} parent=47 // pred_check_branch
          %619 = sbr.rel (%p617) target = $region68
        $region67: #{tpu_custom_call.1} parent=47 // pred_region
          %s620 = smul.u32 %s30, 2
          %s621 = sadd.s32 %s620, %s32
          %s623 = ssub.s32 128, 128
          %624 = vsyncadd %s613, %s623
          %s625 = smul.addr %s621, 2
          %s626 = sadd.s32 %s31, %s625
          %s627 = smul.addr %s626, 128
          %s628 = scalar_lea.hbm %s7, %s627
          %s630 = sshll.u32 %s616, 4
          %s631 = int_to_ptr.vmem [resolvable:$true] %s630
          %633 = dma.vmem_to_hbm [thread:$0]  %s631, 128, %s628, %s613
        $region68: #{tpu_custom_call.1} parent=47 // pred_fallthru
          _
      $region48: #{tpu_custom_call.1} parent=5 // pred_fallthru
        _
      %p634 = scmp.le.s32.totalorder 2, %s20
      // Predicated region
      $region69: #{tpu_custom_call.1} parent=5 // pred_check
        %p635 = pneg %p634
      $region70: #{tpu_custom_call.1} parent=5 // pred_check_branch
        %637 = sbr.rel (%p635) target = $region72
      $region71: #{tpu_custom_call.1} parent=5 // pred_region
        %s638 = ssub.s32 %s20, 2
        // Predicated region
        $region73: #{tpu_custom_call.1} parent=71 // pred_check
          %p639 = pneg %p246
        $region74: #{tpu_custom_call.1} parent=71 // pred_check_branch
          %641 = sbr.rel (%p639) target = $region76
        $region75: #{tpu_custom_call.1} parent=71 // pred_region
          %s642 = sand.u32 %s231, 1
          %s643 = scalar_lea.sflag [#allocation5], %s642
          %s644 = sand.u32 %s231, 1
          %s645 = smul.addr %s644, 8
          %s646 = scalar_lea.vmem [#allocation9], %s645
          %647 = dma.done %s643, 128
        $region76: #{tpu_custom_call.1} parent=71 // pred_fallthru
          _
      $region72: #{tpu_custom_call.1} parent=5 // pred_fallthru
        _
    $region6: #{tpu_custom_call.1} parent=1 // loop_footer
      %s24 = sadd.s32 1, %s20
    $region7: #{tpu_custom_call.1} parent=1 // loop_footer_branch
      %19 = sbr.rel target = $region3
    $region8: #{tpu_custom_call.1} parent=1 // loop_exit
      _
    %648 = vsyncpa [#allocation4], 1
    %s649 = scalar_lea.sflag [#allocation4], 1
    %650 = vsyncpa %s649, 1
    %651 = vsyncpa [#allocation7], 1
    %652 = vsyncpa [#allocation5], 1
    %s653 = scalar_lea.sflag [#allocation5], 1
    %654 = vsyncpa %s653, 1

</llo_original>
